<compile_context>
chip_gen: v7x
topology: tpu7x:2x2x1
jax: 0.10.0
libtpu: 0.0.40
codegen_flags: <defaults>
</compile_context>

<pallas_src>
import functools

import jax
import jax.numpy as jnp
from jax import lax
from jax.experimental import pallas as pl
from jax.experimental.pallas import tpu as pltpu

_VMEM_LIMIT = 32 * 1024 * 1024  # explicit scoped-VMEM budget (safe on v5e/v6e/v7x)


def _pick_row_tile(M):
    """Largest convenient row tile that divides M (keeps (8,128) rule: D dim is full)."""
    for t in (512, 256, 128):
        if M % t == 0:
            return t
    return M


def _ln_rows(x, g, b, eps=1e-6):
    # Annotated-transformer LayerNorm: a_2 * (x - mean) / (std + eps) + b_2,
    # with torch-Tensor.std() default (unbiased, ddof=1). Reciprocal once per row.
    d = x.shape[-1]
    mean = jnp.mean(x, axis=-1, keepdims=True)
    var = jnp.sum((x - mean) ** 2, axis=-1, keepdims=True) / (d - 1)
    inv = pl.reciprocal(jnp.sqrt(var) + eps, approx=False)
    return g * (x - mean) * inv + b


# ------------------- fused LayerNorm + QKV projection kernel -------------------
def _ln_qkv_kernel(x_ref, g_ref, b_ref, w_ref, wb_ref, o_ref):
    y = _ln_rows(x_ref[...], g_ref[...], b_ref[...])
    o_ref[...] = (
        jnp.dot(y, w_ref[...], preferred_element_type=jnp.float32) + wb_ref[...]
    ).astype(o_ref.dtype)


def ln_qkv_proj(x2d, g, b, wqkv, bqkv):
    # x2d: (M, D); wqkv: (D, 3D); bqkv: (3D,)
    M, D = x2d.shape
    N = wqkv.shape[1]
    tm = _pick_row_tile(M)
    return pl.pallas_call(
        _ln_qkv_kernel,
        out_shape=jax.ShapeDtypeStruct((M, N), x2d.dtype),
        grid=(M // tm,),
        in_specs=[
            pl.BlockSpec((tm, D), lambda i: (i, 0)),
            pl.BlockSpec((1, D), lambda i: (0, 0)),
            pl.BlockSpec((1, D), lambda i: (0, 0)),
            pl.BlockSpec((D, N), lambda i: (0, 0)),   # weight stays VMEM-resident
            pl.BlockSpec((1, N), lambda i: (0, 0)),
        ],
        out_specs=pl.BlockSpec((tm, N), lambda i: (i, 0)),
        compiler_params=pltpu.CompilerParams(
            dimension_semantics=("parallel",),
            vmem_limit_bytes=_VMEM_LIMIT,
        ),
    )(x2d, g.reshape(1, D), b.reshape(1, D), wqkv, bqkv.reshape(1, N))


# -------- fused multi-head attention + output projection + residual kernel -----
def _attn_out_kernel(qkv_ref, m_ref, wo_ref, bo_ref, r_ref, o_ref, *, n_heads, dk, scale):
    qkv = qkv_ref[0]          # (S, 3D)
    add_m = m_ref[0]          # (1, S) additive mask, broadcasts over query rows
    D = n_heads * dk
    head_outs = []
    for h in range(n_heads):  # static loop; heads are static lane slices of D
        q = qkv[:, h * dk:(h + 1) * dk]
        k = qkv[:, D + h * dk:D + (h + 1) * dk]
        v = qkv[:, 2 * D + h * dk:2 * D + (h + 1) * dk]
        # contract last axes directly (no explicit K transpose)
        s = lax.dot_general(q, k, (((1,), (1,)), ((), ())),
                            preferred_element_type=jnp.float32) * scale
        s = s + add_m                                  # masked_fill -> additive -1e9
        s = s - jnp.max(s, axis=-1, keepdims=True)
        p = jnp.exp(s)
        p = p * pl.reciprocal(jnp.sum(p, axis=-1, keepdims=True), approx=True)
        head_outs.append(jnp.dot(p, v, preferred_element_type=jnp.float32))
    attn = jnp.concatenate(head_outs, axis=-1)         # (S, D) lane-dense
    o_ref[0] = (
        r_ref[0]
        + jnp.dot(attn, wo_ref[...], preferred_element_type=jnp.float32)
        + bo_ref[...]
    ).astype(o_ref.dtype)


def attention_block(qkv, addmask, wo, bo, x_res, n_heads):
    # qkv: (B, S, 3D); addmask: (B, 1, S); x_res: (B, S, D)
    B, S, D = x_res.shape
    dk = D // n_heads
    kernel = functools.partial(
        _attn_out_kernel, n_heads=n_heads, dk=dk, scale=1.0 / float(dk) ** 0.5
    )
    return pl.pallas_call(
        kernel,
        out_shape=jax.ShapeDtypeStruct((B, S, D), x_res.dtype),
        grid=(B,),
        in_specs=[
            pl.BlockSpec((1, S, 3 * D), lambda b: (b, 0, 0)),
            pl.BlockSpec((1, 1, S), lambda b: (b, 0, 0)),
            pl.BlockSpec((D, D), lambda b: (0, 0)),
            pl.BlockSpec((1, D), lambda b: (0, 0)),
            pl.BlockSpec((1, S, D), lambda b: (b, 0, 0)),
        ],
        out_specs=pl.BlockSpec((1, S, D), lambda b: (b, 0, 0)),
        compiler_params=pltpu.CompilerParams(
            dimension_semantics=("parallel",),
            vmem_limit_bytes=_VMEM_LIMIT,
        ),
    )(qkv, addmask, wo, bo.reshape(1, D), x_res)


# ------------------ fused LayerNorm + FFN + residual kernel --------------------
def _ln_ffn_residual_kernel(x_ref, g_ref, b_ref, w1_ref, b1_ref, w2_ref, b2_ref, o_ref):
    x = x_ref[...]
    y = _ln_rows(x, g_ref[...], b_ref[...])
    h = jnp.maximum(
        jnp.dot(y, w1_ref[...], preferred_element_type=jnp.float32) + b1_ref[...], 0.0
    )  # ReLU; dropout is identity in eval
    o_ref[...] = (
        x + jnp.dot(h, w2_ref[...], preferred_element_type=jnp.float32) + b2_ref[...]
    ).astype(o_ref.dtype)


def ln_ffn_residual(x2d, g, b, w1, b1, w2, b2):
    M, D = x2d.shape
    F = w1.shape[1]
    tm = _pick_row_tile(M)   # bounds the live (tm, F) hidden activation in VMEM
    return pl.pallas_call(
        _ln_ffn_residual_kernel,
        out_shape=jax.ShapeDtypeStruct((M, D), x2d.dtype),
        grid=(M // tm,),
        in_specs=[
            pl.BlockSpec((tm, D), lambda i: (i, 0)),
            pl.BlockSpec((1, D), lambda i: (0, 0)),
            pl.BlockSpec((1, D), lambda i: (0, 0)),
            pl.BlockSpec((D, F), lambda i: (0, 0)),   # weights VMEM-resident across row tiles
            pl.BlockSpec((1, F), lambda i: (0, 0)),
            pl.BlockSpec((F, D), lambda i: (0, 0)),
            pl.BlockSpec((1, D), lambda i: (0, 0)),
        ],
        out_specs=pl.BlockSpec((tm, D), lambda i: (i, 0)),
        compiler_params=pltpu.CompilerParams(
            dimension_semantics=("parallel",),
            vmem_limit_bytes=_VMEM_LIMIT,
        ),
    )(x2d, g.reshape(1, D), b.reshape(1, D), w1, b1.reshape(1, F), w2, b2.reshape(1, D))


# --------------------------- final LayerNorm kernel ----------------------------
def _layernorm_kernel(x_ref, g_ref, b_ref, o_ref):
    o_ref[...] = _ln_rows(x_ref[...], g_ref[...], b_ref[...]).astype(o_ref.dtype)


def layernorm(x, gamma, beta):
    B, S, D = x.shape
    M = B * S
    tm = _pick_row_tile(M)
    out = pl.pallas_call(
        _layernorm_kernel,
        out_shape=jax.ShapeDtypeStruct((M, D), x.dtype),
        grid=(M // tm,),
        in_specs=[
            pl.BlockSpec((tm, D), lambda i: (i, 0)),
            pl.BlockSpec((1, D), lambda i: (0, 0)),
            pl.BlockSpec((1, D), lambda i: (0, 0)),
        ],
        out_specs=pl.BlockSpec((tm, D), lambda i: (i, 0)),
        compiler_params=pltpu.CompilerParams(
            dimension_semantics=("parallel",),
            vmem_limit_bytes=_VMEM_LIMIT,
        ),
    )(x.reshape(M, D), gamma.reshape(1, D), beta.reshape(1, D))
    return out.reshape(B, S, D)


# ------------------------------ Model wiring -----------------------------------
def encoder_forward(x, mask, params, n_heads):
    B, S, D = x.shape
    # additive mask: 0 where attendable, -1e9 where masked; post-softmax this matches
    # masked_fill(mask == 0, -1e9) (masked probabilities underflow to exactly 0 in f32).
    addmask = (mask.astype(jnp.float32) - 1.0) * 1e9   # (B, 1, S)

    for lp in params["layers"]:
        x2d = x.reshape(B * S, D)
        # sublayer 0: x + SelfAttn(LayerNorm(x))  — LN fused into the QKV projection,
        # output projection + residual fused into the attention kernel.
        qkv = ln_qkv_proj(x2d, lp["ln1_g"], lp["ln1_b"], lp["wqkv"], lp["bqkv"])
        qkv = qkv.reshape(B, S, 3 * D)                 # pure reshape, no transpose
        x = attention_block(qkv, addmask, lp["wo"], lp["bo"], x, n_heads)
        # sublayer 1: x + FFN(LayerNorm(x)) — LN2 + both matmuls + residual in one kernel.
        x2d = ln_ffn_residual(
            x.reshape(B * S, D), lp["ln2_g"], lp["ln2_b"],
            lp["w1"], lp["b1"], lp["w2"], lp["b2"],
        )
        x = x2d.reshape(B, S, D)

    if x.shape[-1] != 1:
        x = layernorm(x, params["norm_g"], params["norm_b"])
    return x


def init_params(key, D, d_ff, n_layers):
    def dense(k, fan_in, fan_out):
        # stored as (in, out), i.e. the transpose of torch's (out, in) weight
        return 0.02 * jax.random.normal(k, (fan_in, fan_out), dtype=jnp.float32)

    layers = []
    for li in range(n_layers):
        ks = jax.random.split(jax.random.fold_in(key, li), 8)
        wq, wk, wv = dense(ks[0], D, D), dense(ks[1], D, D), dense(ks[2], D, D)
        bq = 0.01 * jax.random.normal(ks[4], (D,), jnp.float32)
        zeros_d = jnp.zeros((D,), jnp.float32)
        layers.append(
            dict(
                ln1_g=jnp.ones((D,), jnp.float32), ln1_b=jnp.zeros((D,), jnp.float32),
                wqkv=jnp.concatenate([wq, wk, wv], axis=1),           # (D, 3D)
                bqkv=jnp.concatenate([bq, zeros_d, zeros_d]),         # (3D,)
                wo=dense(ks[3], D, D), bo=jnp.zeros((D,), jnp.float32),
                ln2_g=jnp.ones((D,), jnp.float32), ln2_b=jnp.zeros((D,), jnp.float32),
                w1=dense(ks[5], D, d_ff), b1=jnp.zeros((d_ff,), jnp.float32),
                w2=dense(ks[6], d_ff, D), b2=jnp.zeros((D,), jnp.float32),
            )
        )
    return dict(
        layers=layers,
        norm_g=jnp.ones((D,), jnp.float32),
        norm_b=jnp.zeros((D,), jnp.float32),
    )


if __name__ == "__main__":
    B, S, D, H, FF, N = 2, 8, 32, 4, 64, 2
    key = jax.random.PRNGKey(0)
    k_x, k_p = jax.random.split(key)

    x = jax.random.normal(k_x, (B, S, D), dtype=jnp.float32)
    # mask out the last 2 key positions of every sequence
    mask = jnp.ones((B, 1, S), dtype=jnp.float32).at[:, :, -2:].set(0.0)

    params = init_params(k_p, D, FF, N)

    out = encoder_forward(x, mask, params, n_heads=H)
    out = jax.block_until_ready(out)

    assert out.shape == (B, S, D), out.shape
    assert jnp.all(jnp.isfinite(out))
    print("KERNEL_OK")
</pallas_src>

<mosaic_0001>
module attributes {stable_mosaic.version = 11 : i64} {
  func.func @_ln_qkv_kernel(%arg0: i32, %arg1: memref<16x32xf32, #tpu.memory_space<vmem>>, %arg2: memref<1x32xf32, #tpu.memory_space<vmem>>, %arg3: memref<1x32xf32, #tpu.memory_space<vmem>>, %arg4: memref<32x96xf32, #tpu.memory_space<vmem>>, %arg5: memref<1x96xf32, #tpu.memory_space<vmem>>, %arg6: memref<16x96xf32, #tpu.memory_space<vmem>>) attributes {dimension_semantics = [#tpu.dimension_semantics<parallel>], iteration_bounds = array<i64: 1>, scalar_prefetch = 0 : i64, scratch_operands = 0 : i64, tpu.core_type = #tpu.core_type<tc>, window_params = [{transform_indices = @transform_0, window_bounds = array<i64: 16, 32>}, {pipeline_mode = #tpu.pipeline_mode<synchronous>, transform_indices = @transform_1, window_bounds = array<i64: 1, 32>}, {pipeline_mode = #tpu.pipeline_mode<synchronous>, transform_indices = @transform_2, window_bounds = array<i64: 1, 32>}, {pipeline_mode = #tpu.pipeline_mode<synchronous>, transform_indices = @transform_3, window_bounds = array<i64: 32, 96>}, {pipeline_mode = #tpu.pipeline_mode<synchronous>, transform_indices = @transform_4, window_bounds = array<i64: 1, 96>}, {transform_indices = @transform_5, window_bounds = array<i64: 16, 96>}]} {
    %c0 = arith.constant 0 : index
    %c0_0 = arith.constant 0 : index
    %0 = vector.load %arg1[%c0, %c0_0] : memref<16x32xf32, #tpu.memory_space<vmem>>, vector<16x32xf32>
    %c0_1 = arith.constant 0 : index
    %c0_2 = arith.constant 0 : index
    %1 = vector.load %arg2[%c0_1, %c0_2] : memref<1x32xf32, #tpu.memory_space<vmem>>, vector<1x32xf32>
    %c0_3 = arith.constant 0 : index
    %c0_4 = arith.constant 0 : index
    %2 = vector.load %arg3[%c0_3, %c0_4] : memref<1x32xf32, #tpu.memory_space<vmem>>, vector<1x32xf32>
    %cst = arith.constant dense<0.000000e+00> : vector<16xf32>
    %3 = vector.multi_reduction <add>, %0, %cst [1] : vector<16x32xf32> to vector<16xf32>
    %4 = vector.shape_cast %3 : vector<16xf32> to vector<16x1xf32>
    %cst_5 = arith.constant 3.200000e+01 : f32
    %5 = vector.broadcast %cst_5 : f32 to vector<16x1xf32>
    %6 = arith.divf %4, %5 : vector<16x1xf32>
    %7 = vector.broadcast %6 : vector<16x1xf32> to vector<16x32xf32>
    %8 = arith.subf %0, %7 : vector<16x32xf32>
    %9 = arith.mulf %8, %8 : vector<16x32xf32>
    %cst_6 = arith.constant dense<0.000000e+00> : vector<16xf32>
    %10 = vector.multi_reduction <add>, %9, %cst_6 [1] : vector<16x32xf32> to vector<16xf32>
    %11 = vector.shape_cast %10 : vector<16xf32> to vector<16x1xf32>
    %cst_7 = arith.constant 3.100000e+01 : f32
    %12 = vector.broadcast %cst_7 : f32 to vector<16x1xf32>
    %13 = arith.divf %11, %12 : vector<16x1xf32>
    %14 = math.sqrt %13 : vector<16x1xf32>
    %cst_8 = arith.constant 9.99999997E-7 : f32
    %15 = vector.broadcast %cst_8 : f32 to vector<16x1xf32>
    %16 = arith.addf %14, %15 : vector<16x1xf32>
    %17 = tpu.reciprocal %16 : vector<16x1xf32> -> vector<16x1xf32>
    %18 = vector.broadcast %6 : vector<16x1xf32> to vector<16x32xf32>
    %19 = arith.subf %0, %18 : vector<16x32xf32>
    %20 = vector.broadcast %1 : vector<1x32xf32> to vector<16x32xf32>
    %21 = arith.mulf %20, %19 : vector<16x32xf32>
    %22 = vector.broadcast %17 : vector<16x1xf32> to vector<16x32xf32>
    %23 = arith.mulf %21, %22 : vector<16x32xf32>
    %24 = vector.broadcast %2 : vector<1x32xf32> to vector<16x32xf32>
    %25 = arith.addf %23, %24 : vector<16x32xf32>
    %c0_9 = arith.constant 0 : index
    %c0_10 = arith.constant 0 : index
    %26 = vector.load %arg4[%c0_9, %c0_10] : memref<32x96xf32, #tpu.memory_space<vmem>>, vector<32x96xf32>
    %cst_11 = arith.constant dense<0.000000e+00> : vector<16x96xf32>
    %27 = tpu.matmul %25, %26, %cst_11 {dimension_numbers = #tpu.dot_dimension_numbers<[1], [0], [0], [1], [0, 0, 1, 1], [], []>} : vector<16x32xf32>, vector<32x96xf32>, vector<16x96xf32> -> vector<16x96xf32>
    %c0_12 = arith.constant 0 : index
    %c0_13 = arith.constant 0 : index
    %28 = vector.load %arg5[%c0_12, %c0_13] : memref<1x96xf32, #tpu.memory_space<vmem>>, vector<1x96xf32>
    %29 = vector.broadcast %28 : vector<1x96xf32> to vector<16x96xf32>
    %30 = arith.addf %27, %29 : vector<16x96xf32>
    %c0_14 = arith.constant 0 : index
    %c0_15 = arith.constant 0 : index
    %31 = vector.load %arg6[%c0_14, %c0_15] : memref<16x96xf32, #tpu.memory_space<vmem>>, vector<16x96xf32>
    tpu.vector_store %arg6[%c0_14, %c0_15], %30 {strides = array<i32>} : memref<16x96xf32, #tpu.memory_space<vmem>>, vector<16x96xf32>,
    return
  }
  func.func @transform_0(%arg0: i32) -> (i32, i32) {
    %c0_i32 = arith.constant 0 : i32
    %c0_i32_0 = arith.constant 0 : i32
    return %arg0, %c0_i32 : i32, i32
  }
  func.func @transform_1(%arg0: i32) -> (i32, i32) {
    %c0_i32 = arith.constant 0 : i32
    %c0_i32_0 = arith.constant 0 : i32
    %c0_i32_1 = arith.constant 0 : i32
    return %c0_i32, %c0_i32_0 : i32, i32
  }
  func.func @transform_2(%arg0: i32) -> (i32, i32) {
    %c0_i32 = arith.constant 0 : i32
    %c0_i32_0 = arith.constant 0 : i32
    %c0_i32_1 = arith.constant 0 : i32
    return %c0_i32, %c0_i32_0 : i32, i32
  }
  func.func @transform_3(%arg0: i32) -> (i32, i32) {
    %c0_i32 = arith.constant 0 : i32
    %c0_i32_0 = arith.constant 0 : i32
    %c0_i32_1 = arith.constant 0 : i32
    return %c0_i32, %c0_i32_0 : i32, i32
  }
  func.func @transform_4(%arg0: i32) -> (i32, i32) {
    %c0_i32 = arith.constant 0 : i32
    %c0_i32_0 = arith.constant 0 : i32
    %c0_i32_1 = arith.constant 0 : i32
    return %c0_i32, %c0_i32_0 : i32, i32
  }
  func.func @transform_5(%arg0: i32) -> (i32, i32) {
    %c0_i32 = arith.constant 0 : i32
    %c0_i32_0 = arith.constant 0 : i32
    return %arg0, %c0_i32 : i32, i32
  }
}

</mosaic_0001>

<llo_original>
// kernel: tpu_custom_call.1
$region0: #{tpu_custom_call.1}
  #allocation0 [shape = 'u32[]', space=smem, size = 0x4, offset = 0x4, fixed_abs, tag = 'smem constant byte address 0x4 - core index']
  #allocation1 [shape = 'u32[144,128]{1,0:T(1,128)}', space=vmem, size = 0x12000, scoped, tag = 'internal scratch']
  %s0 = inlined_call_operand.hbm [shape: f32[16,32], index: 0, kind: input, shape index: {}]
  %s1 = inlined_call_operand.vmem [shape: f32[1,32], index: 1, kind: input, shape index: {}]
  %s2 = inlined_call_operand.vmem [shape: f32[1,32], index: 2, kind: input, shape index: {}]
  %s3 = inlined_call_operand.hbm [shape: f32[32,96], index: 3, kind: input, shape index: {}]
  %s4 = inlined_call_operand.vmem [shape: f32[1,96], index: 4, kind: input, shape index: {}]
  %s5 = inlined_call_operand.hbm [shape: f32[16,96], index: 5, kind: output, shape index: {}]
  %s6 = sld [smem:[#allocation0]]
  $region38: #{tpu_custom_call.1} parent=0
    _
  %s8 = ssub.s32 1, %s6
  %s9 = scalar_select 0, %s8, %s6
  $region1: #{tpu_custom_call.1} parent=0
    #allocation2 [shape = 'u8[8192]{0}', space=vmem, size = 0x2000, scoped, tag = 'input window, operand 0, single buffered']
    #allocation3 [shape = 's32[1]{0}', space=sflag, size = 0x4, scoped, tag = 'scoped memory for tpu_custom_call.1']
    #allocation4 [shape = 's32[1]{0}', space=sflag, size = 0x4, scoped, tag = 'scoped memory for tpu_custom_call.1']
    #allocation5 [shape = 'u8[16384]{0}', space=vmem, size = 0x4000, scoped, tag = 'input window, operand 3, single buffered']
    #allocation6 [shape = 's32[1]{0}', space=sflag, size = 0x4, scoped, tag = 'scoped memory for tpu_custom_call.1']
    #allocation7 [shape = 'u8[8192]{0}', space=vmem, size = 0x2000, scoped, tag = 'output window, operand 0, single buffered']
    %10 = vsyncpa [#allocation3], 0
    %11 = vsyncpa [#allocation6], 0
    %12 = vsyncpa [#allocation4], 0
    // Predicated region
    $region2: #{tpu_custom_call.1} parent=1 // pred_check
      _
    $region3: #{tpu_custom_call.1} parent=1 // pred_check_branch
      %14 = sbr.rel (0) target = $region5
    $region4: #{tpu_custom_call.1} parent=1 // pred_region
      %s16 = ssub.s32 256, 256
      %17 = vsyncadd [#allocation3], %s16
      %s18 = sshll.u32 [#allocation2], 4
      %s19 = int_to_ptr.vmem [resolvable:$true] %s18
      %24 = dma.hbm_to_vmem [thread:$0]  %s0, 256, %s19, [#allocation3], 128, 128, 8
    $region5: #{tpu_custom_call.1} parent=1 // pred_fallthru
      _
    // Predicated region
    $region6: #{tpu_custom_call.1} parent=1 // pred_check
      _
    $region7: #{tpu_custom_call.1} parent=1 // pred_check_branch
      %26 = sbr.rel (0) target = $region9
    $region8: #{tpu_custom_call.1} parent=1 // pred_region
      _
    $region9: #{tpu_custom_call.1} parent=1 // pred_fallthru
      _
    // Predicated region
    $region10: #{tpu_custom_call.1} parent=1 // pred_check
      _
    $region11: #{tpu_custom_call.1} parent=1 // pred_check_branch
      %28 = sbr.rel (0) target = $region13
    $region12: #{tpu_custom_call.1} parent=1 // pred_region
      _
    $region13: #{tpu_custom_call.1} parent=1 // pred_fallthru
      _
    // Predicated region
    $region14: #{tpu_custom_call.1} parent=1 // pred_check
      _
    $region15: #{tpu_custom_call.1} parent=1 // pred_check_branch
      %30 = sbr.rel (0) target = $region17
    $region16: #{tpu_custom_call.1} parent=1 // pred_region
      %s32 = ssub.s32 512, 512
      %33 = vsyncadd [#allocation6], %s32
      %s34 = sshll.u32 [#allocation5], 4
      %s35 = int_to_ptr.vmem [resolvable:$true] %s34
      %40 = dma.hbm_to_vmem [thread:$0]  %s3, 512, %s35, [#allocation6], 128, 128, 8
    $region17: #{tpu_custom_call.1} parent=1 // pred_fallthru
      _
    // Predicated region
    $region18: #{tpu_custom_call.1} parent=1 // pred_check
      _
    $region19: #{tpu_custom_call.1} parent=1 // pred_check_branch
      %42 = sbr.rel (0) target = $region21
    $region20: #{tpu_custom_call.1} parent=1 // pred_region
      _
    $region21: #{tpu_custom_call.1} parent=1 // pred_fallthru
      _
    // Predicated region
    $region22: #{tpu_custom_call.1} parent=1 // pred_check
      _
    $region23: #{tpu_custom_call.1} parent=1 // pred_check_branch
      %44 = sbr.rel (0) target = $region25
    $region24: #{tpu_custom_call.1} parent=1 // pred_region
      %45 = dma.done [#allocation3], 256
    $region25: #{tpu_custom_call.1} parent=1 // pred_fallthru
      _
    // Predicated region
    $region26: #{tpu_custom_call.1} parent=1 // pred_check
      _
    $region27: #{tpu_custom_call.1} parent=1 // pred_check_branch
      %47 = sbr.rel (0) target = $region29
    $region28: #{tpu_custom_call.1} parent=1 // pred_region
      %48 = dma.done [#allocation6], 512
    $region29: #{tpu_custom_call.1} parent=1 // pred_fallthru
      _
    %v49 = vld [vmem:[#allocation2] sm:$0xff]
    %v50 = vld [vmem:[#allocation2 + $0x8] sm:$0xff]
    %v51 = vld [vmem:[%s1] sm:$0x1]
    %v52 = vld [vmem:[%s2] sm:$0x1]
    %vm53 = vcmask 261120
    %v54 = vsel %vm53, %v49, 0.0
    %55 = vadd.xlane.f32.xlu0 %v54
    %v56 = vpop.xlane.xlu0 %55
    %v57 = vsel %vm53, %v50, 0.0
    %58 = vadd.xlane.f32.xlu0 %v57
    %v59 = vpop.xlane.xlu0 %58
    %v60 = vrcp.pop 32.0
    %v61 = vmul.f32 %v56, %v60
    %v62 = vmul.f32 %v59, %v60
    %v63 = vsub.f32 %v49, %v61
    %v64 = vsub.f32 %v50, %v62
    %v65 = vmul.f32 %v63, %v63
    %v66 = vmul.f32 %v64, %v64
    %v67 = vsel %vm53, %v65, 0.0
    %68 = vadd.xlane.f32.xlu0 %v67
    %v69 = vpop.xlane.xlu0 %68
    %v70 = vsel %vm53, %v66, 0.0
    %71 = vadd.xlane.f32.xlu0 %v70
    %v72 = vpop.xlane.xlu0 %71
    %v73 = vrcp.pop 31.0
    %v74 = vmul.f32 %v69, %v73
    %v75 = vmul.f32 %v72, %v73
    %v76 = vrsqrt.pop %v74
    %v77 = vmul.f32 %v74, %v76
    %vm78 = vcmp.eq.f32.partialorder %v74, inf
    %v79 = vsel %vm78, %v74, %v77
    %vm80 = vcmp.eq.f32.partialorder %v74, 0.0
    %v81 = vand.u32 %v74, 2147483648
    %v82 = vsel %vm80, %v81, %v79
    %v83 = vrsqrt.pop %v75
    %v84 = vmul.f32 %v75, %v83
    %vm85 = vcmp.eq.f32.partialorder %v75, inf
    %v86 = vsel %vm85, %v75, %v84
    %vm87 = vcmp.eq.f32.partialorder %v75, 0.0
    %v88 = vand.u32 %v75, 2147483648
    %v89 = vsel %vm87, %v88, %v86
    %v90 = vadd.f32 %v82, 1e-06
    %v91 = vadd.f32 %v89, 1e-06
    %v92 = vrcp.pop %v90
    %v93 = vrcp.pop %v91
    %v95 = vlaneseq
    %v96 = vshrl.u32 %v95, 7
    %v97 = vsub.s32 0, %v96
    %v98 = vrot.slane %v51, %v97
    %v100 = vmul.f32 %v98, %v63
    %v101 = vmul.f32 %v98, %v64
    %v102 = vmul.f32 %v100, %v92
    %v103 = vmul.f32 %v101, %v93
    %v105 = vlaneseq
    %v106 = vshrl.u32 %v105, 7
    %v107 = vsub.s32 0, %v106
    %v108 = vrot.slane %v52, %v107
    %v110 = vadd.f32 %v102, %v108
    %v111 = vadd.f32 %v103, %v108
    %v112 = vld [vmem:[#allocation5] sm:$0xff]
    %v113 = vld [vmem:[#allocation5 + $0x8] sm:$0xff]
    %v114 = vld [vmem:[#allocation5 + $0x10] sm:$0xff]
    %v115 = vld [vmem:[#allocation5 + $0x18] sm:$0xff]
    %v116 = vld [vmem:[%s4] sm:$0x1]
    %v118 = vlaneseq
    %v119 = vshrl.u32 %v118, 7
    %v120 = vsub.s32 0, %v119
    %v121 = vrot.slane %v116, %v120
    %v124 = vsel %vm53, %v110, 0
    %v127 = vsel %vm53, %v111, 0
    %129 = vmatprep.subr.mxu0 0.0
    %130 = vmatpush1.msra.mxu0 %v112
    %131 = vmatprep.subr.mxu0 0.0
    %132 = vmatpush1.msra.mxu0 %v113
    %133 = vmatprep.subr.mxu0 0.0
    %134 = vmatpush1.msra.mxu0 %v114
    %135 = vmatprep.subr.mxu0 0.0
    %136 = vmatpush1.msra.mxu0 %v115
    %137 = vmatprep.subr.mxu0 0.0
    %138 = vmatpush1.msra.mxu0 0.0
    %139 = vmatprep.subr.mxu0 0.0
    %140 = vmatpush1.msra.mxu0 0.0
    %141 = vmatprep.subr.mxu0 0.0
    %142 = vmatpush1.msra.mxu0 0.0
    %143 = vmatprep.subr.mxu0 0.0
    %144 = vmatpush1.msra.mxu0 0.0
    %145 = vmatprep.subr.mxu0 0.0
    %146 = vmatpush1.msra.mxu0 0.0
    %147 = vmatprep.subr.mxu0 0.0
    %148 = vmatpush1.msra.mxu0 0.0
    %149 = vmatprep.subr.mxu0 0.0
    %150 = vmatpush1.msra.mxu0 0.0
    %151 = vmatprep.subr.mxu0 0.0
    %152 = vmatpush1.msra.mxu0 0.0
    %153 = vmatprep.subr.mxu0 0.0
    %154 = vmatpush1.msra.mxu0 0.0
    %155 = vmatprep.subr.mxu0 0.0
    %156 = vmatpush1.msra.mxu0 0.0
    %157 = vmatprep.subr.mxu0 0.0
    %158 = vmatpush1.msra.mxu0 0.0
    %159 = vmatprep.subr.mxu0 0.0
    %160 = vmatpush1.msra.mxu0 0.0
    %161 = vmatprep.subr.mxu0 0.0
    %162 = vmatpush1.msra.mxu0 0.0
    %163 = vmatprep.subr.mxu0 0.0
    %164 = vmatpush1.msra.mxu0 0.0
    %165 = vmatprep.subr.mxu0 0.0
    %166 = vmatpush1.msra.mxu0 0.0
    %167 = vmatprep.subr.mxu0 0.0
    %168 = vmatpush1.msra.mxu0 0.0
    %169 = vmatprep.subr.mxu0 0.0
    %170 = vmatpush1.msra.mxu0 0.0
    %171 = vmatprep.subr.mxu0 0.0
    %172 = vmatpush1.msra.mxu0 0.0
    %173 = vmatprep.subr.mxu0 0.0
    %174 = vmatpush1.msra.mxu0 0.0
    %175 = vmatprep.subr.mxu0 0.0
    %176 = vmatpush1.msra.mxu0 0.0
    %177 = vmatprep.subr.mxu0 0.0
    %178 = vmatpush1.msra.mxu0 0.0
    %179 = vmatprep.subr.mxu0 0.0
    %180 = vmatpush1.msra.mxu0 0.0
    %181 = vmatprep.subr.mxu0 0.0
    %182 = vmatpush1.msra.mxu0 0.0
    %183 = vmatprep.subr.mxu0 0.0
    %184 = vmatpush1.msra.mxu0 0.0
    %185 = vmatprep.subr.mxu0 0.0
    %186 = vmatpush1.msra.mxu0 0.0
    %187 = vmatprep.subr.mxu0 0.0
    %188 = vmatpush1.msra.mxu0 0.0
    %189 = vmatprep.subr.mxu0 0.0
    %190 = vmatpush1.msra.mxu0 0.0
    %191 = vmatprep.subr.mxu0 0.0
    %192 = vmatpush1.msra.mxu0 0.0
    %193 = vmatprep.mubr.f32.mxu0 0.0
    %194 = vmatmul.mubr.f32.gmra.mrb[0].mxu0 %v124
    %v195 = vpop.f32.mrb[0].mxu0
    %v196 = vadd.f32 %v121, %v195
    %v197 = vpop.f32.mrb[0].mxu0
    %198 = vmatprep.mubr.f32.mxu0 0.0
    %199 = vmatmul.mubr.f32.gmra.mrb[0].mxu0 %v127
    %v200 = vpop.f32.mrb[0].mxu0
    %v201 = vadd.f32 %v121, %v200
    %v202 = vpop.f32.mrb[0].mxu0
    %203 = vdwg.mxu0
    %vm204 = vcmask 785408
    %205 = vst.msk [vmem:[#allocation7] sm:$0xff] %vm204, %v196
    %206 = vst.msk [vmem:[#allocation7 + $0x8] sm:$0xff] %vm204, %v201
    // Predicated region
    $region30: #{tpu_custom_call.1} parent=1 // pred_check
      _
    $region31: #{tpu_custom_call.1} parent=1 // pred_check_branch
      %208 = sbr.rel (0) target = $region33
    $region32: #{tpu_custom_call.1} parent=1 // pred_region
      %s210 = ssub.s32 256, 256
      %211 = vsyncadd [#allocation4], %s210
      %s212 = sshll.u32 [#allocation7], 4
      %s213 = int_to_ptr.vmem [resolvable:$true] %s212
      %218 = dma.vmem_to_hbm [thread:$0]  %s213, 256, %s5, [#allocation4], 128, 128, 8
    $region33: #{tpu_custom_call.1} parent=1 // pred_fallthru
      _
    // Predicated region
    $region34: #{tpu_custom_call.1} parent=1 // pred_check
      _
    $region35: #{tpu_custom_call.1} parent=1 // pred_check_branch
      %220 = sbr.rel (0) target = $region37
    $region36: #{tpu_custom_call.1} parent=1 // pred_region
      %221 = dma.done [#allocation4], 256
    $region37: #{tpu_custom_call.1} parent=1 // pred_fallthru
      _
    %222 = vsyncpa [#allocation3], 1
    %223 = vsyncpa [#allocation6], 1
    %224 = vsyncpa [#allocation4], 1

</llo_original>
